<compile_context>
chip_gen: v5e
topology: v5e:2x2
jax: 0.10.0
libtpu: 0.0.40
codegen_flags: <defaults>
</compile_context>

<pallas_src>
import functools

import jax
import jax.numpy as jnp
from jax.experimental import pallas as pl
from jax.experimental.pallas import tpu as pltpu


def _round_up(n, m):
    return ((n + m - 1) // m) * m


def _center_loss_kernel(labels_ref, x_ref, c_ref, dist_ref, *, true_batch):
    """One batch tile: dist_ref[r] = clamp(||x_r - centers[label_r]||^2), 0 if padded."""
    i = pl.program_id(0)
    tb = x_ref.shape[0]

    x = x_ref[...]                       # (TB, D), input dtype (f32 or bf16)
    labels = labels_ref[...]             # (TB, 1) int32
    centers = c_ref[...]                 # (C, D), resident table, input dtype
    num_classes = centers.shape[0]

    # Gather centers[labels] as a one-hot matmul on the (otherwise idle) MXU.
    # Keep matmul operands in the centers dtype (bf16 stays bf16, f32 accumulate).
    class_ids = jax.lax.broadcasted_iota(jnp.int32, (tb, num_classes), 1)
    one_hot = (labels == class_ids).astype(centers.dtype)                # (TB, C)
    c = jnp.dot(one_hot, centers, preferred_element_type=jnp.float32)    # (TB, D) f32

    # ||x - c||^2 per row: f32 residual math, single lane-axis reduce.
    d = x.astype(jnp.float32) - c
    dist = jnp.sum(d * d, axis=-1, keepdims=True)                        # (TB, 1)
    dist = jnp.clip(dist, 1e-12, 1e12)

    # Rows beyond the true batch (padding) must contribute exactly 0.
    row = jax.lax.broadcasted_iota(jnp.int32, (tb, 1), 0) + i * tb
    dist_ref[...] = jnp.where(row < true_batch, dist, 0.0)


def _center_loss_ref(x, labels, centers, scale):
    """Pure-JAX reference mirroring the PyTorch forward (expanded form)."""
    b = x.shape[0]
    xf = x.astype(jnp.float32)
    cf = centers.astype(jnp.float32)[labels]
    dist = (xf ** 2).sum(1) + (cf ** 2).sum(1) - 2.0 * (xf * cf).sum(1)
    dist = jnp.clip(dist, 1e-12, 1e12)
    return dist.sum() / b * scale


def _vmem_capacity_bytes():
    try:
        return int(pltpu.get_tpu_info().vmem_capacity_bytes)
    except Exception:
        return 64 * 1024 * 1024  # conservative fallback: v7x per-TensorCore VMEM


def _pick_batch_tile(D, C, x_itemsize, c_itemsize, vmem_cap):
    # Padded resident centers footprint (sublane/lane padding).
    centers_bytes = _round_up(C, 8) * _round_up(D, 128) * c_itemsize
    # Per-row VMEM cost: double-buffered x block + f32 elementwise temporaries
    # (c, d, d*d) + labels/output blocks (noise).
    per_row = 2 * D * x_itemsize + 3 * D * 4 + 16
    budget = vmem_cap // 2                       # leave headroom for the compiler
    avail = max(budget - 2 * centers_bytes - (1 << 20), per_row * 8)
    tb_cap = avail // per_row
    # Target ~4 MiB per x block: big enough that DMA time dominates the ~0.35 us
    # per-grid-step overhead (85%+ of HBM roofline on v5e/v6e/v7x).
    tb_target = (4 * 1024 * 1024) // (D * x_itemsize)
    tb = max(8, min(tb_cap, tb_target))
    return max(8, (tb // 8) * 8)


def center_loss(x, labels, centers, scale, *, block_rows=None, min_pallas_batch=32):
    """x: (B, D) float, labels: (B,) int, centers: (C, D) float -> scalar f32."""
    B, D = x.shape
    C, Dc = centers.shape
    assert D == Dc

    # Tiny batches: fixed pallas_call launch + pipeline setup dominates — let XLA
    # fuse the few-KiB elementwise+reduce instead.
    if B < min_pallas_batch:
        return _center_loss_ref(x, labels, centers, scale)

    vmem_cap = _vmem_capacity_bytes()
    x_itemsize = jnp.dtype(x.dtype).itemsize
    c_itemsize = jnp.dtype(centers.dtype).itemsize

    if block_rows is not None:
        tb = max(8, (int(block_rows) // 8) * 8)
    else:
        tb = _pick_batch_tile(D, C, x_itemsize, c_itemsize, vmem_cap)
    if B <= tb:
        tb = _round_up(B, 8)
    b_pad = _round_up(B, tb)
    num_tiles = b_pad // tb

    # Pad batch to a tile multiple; padded rows are masked to 0 inside the kernel.
    if b_pad != B:
        x = jnp.pad(x, ((0, b_pad - B), (0, 0)))
        labels = jnp.pad(labels, (0, b_pad - B))
    labels2d = labels.astype(jnp.int32).reshape(b_pad, 1)

    # Single-buffer the constant-index centers block (it is never re-fetched).
    try:
        centers_spec = pl.BlockSpec((C, D), lambda i: (0, 0),
                                    pipeline_mode=pl.Buffered(1))
    except TypeError:  # older Pallas without the pipeline_mode kwarg
        centers_spec = pl.BlockSpec((C, D), lambda i: (0, 0))

    centers_bytes = _round_up(C, 8) * _round_up(D, 128) * c_itemsize
    est = (2 * tb * D * x_itemsize        # double-buffered x blocks
           + 2 * centers_bytes            # centers (be generous)
           + 4 * tb * D * 4               # f32 temporaries headroom
           + 4 * tb * 4)                  # labels + dist blocks
    vmem_limit = max(32 * 1024 * 1024, est + (8 << 20))
    vmem_limit = int(min(vmem_limit, vmem_cap - (2 << 20)))

    kernel = functools.partial(_center_loss_kernel, true_batch=int(B))

    dist = pl.pallas_call(
        kernel,
        out_shape=jax.ShapeDtypeStruct((b_pad, 1), jnp.float32),
        grid_spec=pltpu.PrefetchScalarGridSpec(
            num_scalar_prefetch=0,
            grid=(num_tiles,),
            in_specs=[
                pl.BlockSpec((tb, 1), lambda i: (i, 0)),   # labels tile
                pl.BlockSpec((tb, D), lambda i: (i, 0)),   # feature tile
                centers_spec,                              # resident centers table
            ],
            out_specs=pl.BlockSpec((tb, 1), lambda i: (i, 0)),
        ),
        compiler_params=pltpu.CompilerParams(
            # Tiles are fully independent -> shard the batch axis across
            # TensorCores on v7x; neutral on single-TC v5e/v6e.
            dimension_semantics=("parallel",),
            vmem_limit_bytes=vmem_limit,
        ),
    )(labels2d, x, centers)

    # Final reduce + mean over the TRUE batch + scale in the wrapper (XLA
    # pairwise sum — better precision than a serial in-kernel f32 accumulator).
    return jnp.sum(dist) * (float(scale) / float(B))


if __name__ == "__main__":
    # Deterministic synthetic "module params" and inputs (no checkpoint load).
    num_classes = 16     # cfg.MODEL.HEADS.NUM_CLASSES
    feat_dim = 128       # cfg.MODEL.HEADS.IN_FEAT
    scale = 0.0005       # cfg.MODEL.LOSSES.Center.SCALE

    key = jax.random.PRNGKey(0)
    k_c, k_x, k_l = jax.random.split(key, 3)
    centers = jax.random.normal(k_c, (num_classes, feat_dim), dtype=jnp.float32)

    # Case 1: small batch, single tile (Pallas path forced).
    batch = 8
    x = jax.random.normal(k_x, (batch, feat_dim), dtype=jnp.float32)
    labels = jax.random.randint(k_l, (batch,), 0, num_classes, dtype=jnp.int32)
    loss = jax.block_until_ready(
        center_loss(x, labels, centers, scale, min_pallas_batch=0))
    ref = _center_loss_ref(x, labels, centers, scale)
    assert jnp.allclose(loss, ref, rtol=1e-5, atol=1e-6), (loss, ref)

    # Case 2: batch not a tile multiple + multiple parallel grid tiles
    # (exercises padding masks and the per-tile partial output path).
    batch2 = 20
    k_x2, k_l2 = jax.random.split(k_x)
    x2 = jax.random.normal(k_x2, (batch2, feat_dim), dtype=jnp.float32)
    labels2 = jax.random.randint(k_l2, (batch2,), 0, num_classes, dtype=jnp.int32)
    loss2 = jax.block_until_ready(
        center_loss(x2, labels2, centers, scale, block_rows=8, min_pallas_batch=0))
    ref2 = _center_loss_ref(x2, labels2, centers, scale)
    assert jnp.allclose(loss2, ref2, rtol=1e-5, atol=1e-6), (loss2, ref2)

    # Case 3: bf16 features/centers exercise the bf16 MXU gather path.
    x3 = x2.astype(jnp.bfloat16)
    centers_bf16 = centers.astype(jnp.bfloat16)
    loss3 = jax.block_until_ready(
        center_loss(x3, labels2, centers_bf16, scale, min_pallas_batch=0))
    ref3 = _center_loss_ref(x3, labels2, centers_bf16, scale)
    assert jnp.allclose(loss3, ref3, rtol=1e-4, atol=1e-5), (loss3, ref3)

    print("KERNEL_OK")
</pallas_src>

<mosaic_0001>
module attributes {stable_mosaic.version = 11 : i64} {
  func.func @_center_loss_kernel(%arg0: i32, %arg1: memref<8x1xi32, #tpu.memory_space<vmem>>, %arg2: memref<8x128xf32, #tpu.memory_space<vmem>>, %arg3: memref<16x128xf32, #tpu.memory_space<vmem>>, %arg4: memref<8x1xf32, #tpu.memory_space<vmem>>) attributes {dimension_semantics = [#tpu.dimension_semantics<parallel>], iteration_bounds = array<i64: 1>, scalar_prefetch = 0 : i64, scratch_operands = 0 : i64, tpu.core_type = #tpu.core_type<tc>, window_params = [{transform_indices = @transform_0, window_bounds = array<i64: 8, 1>}, {transform_indices = @transform_1, window_bounds = array<i64: 8, 128>}, {pipeline_mode = #tpu.pipeline_mode<synchronous>, transform_indices = @transform_2, window_bounds = array<i64: 16, 128>}, {transform_indices = @transform_3, window_bounds = array<i64: 8, 1>}]} {
    %c0 = arith.constant 0 : index
    %c0_0 = arith.constant 0 : index
    %0 = vector.load %arg2[%c0, %c0_0] : memref<8x128xf32, #tpu.memory_space<vmem>>, vector<8x128xf32>
    %c0_1 = arith.constant 0 : index
    %c0_2 = arith.constant 0 : index
    %1 = vector.load %arg1[%c0_1, %c0_2] : memref<8x1xi32, #tpu.memory_space<vmem>>, vector<8x1xi32>
    %c0_3 = arith.constant 0 : index
    %c0_4 = arith.constant 0 : index
    %2 = vector.load %arg3[%c0_3, %c0_4] : memref<16x128xf32, #tpu.memory_space<vmem>>, vector<16x128xf32>
    %3 = tpu.iota {dimensions = array<i32: 1>} : vector<8x16xi32>
    %4 = vector.broadcast %1 : vector<8x1xi32> to vector<8x16xi32>
    %5 = arith.cmpi eq, %4, %3 : vector<8x16xi32>
    %6 = arith.extui %5 : vector<8x16xi1> to vector<8x16xi32>
    %7 = arith.sitofp %6 : vector<8x16xi32> to vector<8x16xf32>
    %cst = arith.constant dense<0.000000e+00> : vector<8x128xf32>
    %8 = tpu.matmul %7, %2, %cst {dimension_numbers = #tpu.dot_dimension_numbers<[1], [0], [0], [1], [0, 0, 1, 1], [], []>} : vector<8x16xf32>, vector<16x128xf32>, vector<8x128xf32> -> vector<8x128xf32>
    %9 = arith.subf %0, %8 : vector<8x128xf32>
    %10 = arith.mulf %9, %9 : vector<8x128xf32>
    %cst_5 = arith.constant dense<0.000000e+00> : vector<8xf32>
    %11 = vector.multi_reduction <add>, %10, %cst_5 [1] : vector<8x128xf32> to vector<8xf32>
    %12 = vector.shape_cast %11 : vector<8xf32> to vector<8x1xf32>
    %cst_6 = arith.constant 9.99999996E-13 : f32
    %cst_7 = arith.constant 9.99999995E+11 : f32
    %13 = vector.broadcast %cst_6 : f32 to vector<8x1xf32>
    %14 = arith.maximumf %13, %12 : vector<8x1xf32>
    %15 = vector.broadcast %cst_7 : f32 to vector<8x1xf32>
    %16 = arith.minimumf %15, %14 : vector<8x1xf32>
    %17 = tpu.iota {dimensions = array<i32: 0>} : vector<8x1xi32>
    %c8_i32 = arith.constant 8 : i32
    %18 = arith.muli %arg0, %c8_i32 : i32
    %19 = vector.broadcast %18 : i32 to vector<8x1xi32>
    %20 = arith.addi %17, %19 : vector<8x1xi32>
    %c8_i32_8 = arith.constant 8 : i32
    %21 = vector.broadcast %c8_i32_8 : i32 to vector<8x1xi32>
    %22 = arith.cmpi slt, %20, %21 : vector<8x1xi32>
    %cst_9 = arith.constant 0.000000e+00 : f32
    %23 = vector.broadcast %cst_9 : f32 to vector<8x1xf32>
    %24 = arith.select %22, %16, %23 : vector<8x1xi1>, vector<8x1xf32>
    %c0_10 = arith.constant 0 : index
    %c0_11 = arith.constant 0 : index
    %25 = vector.load %arg4[%c0_10, %c0_11] : memref<8x1xf32, #tpu.memory_space<vmem>>, vector<8x1xf32>
    tpu.vector_store %arg4[%c0_10, %c0_11], %24 {strides = array<i32>} : memref<8x1xf32, #tpu.memory_space<vmem>>, vector<8x1xf32>,
    return
  }
  func.func @transform_0(%arg0: i32) -> (i32, i32) {
    %c0_i32 = arith.constant 0 : i32
    %c0_i32_0 = arith.constant 0 : i32
    return %arg0, %c0_i32 : i32, i32
  }
  func.func @transform_1(%arg0: i32) -> (i32, i32) {
    %c0_i32 = arith.constant 0 : i32
    %c0_i32_0 = arith.constant 0 : i32
    return %arg0, %c0_i32 : i32, i32
  }
  func.func @transform_2(%arg0: i32) -> (i32, i32) {
    %c0_i32 = arith.constant 0 : i32
    %c0_i32_0 = arith.constant 0 : i32
    %c0_i32_1 = arith.constant 0 : i32
    return %c0_i32, %c0_i32_0 : i32, i32
  }
  func.func @transform_3(%arg0: i32) -> (i32, i32) {
    %c0_i32 = arith.constant 0 : i32
    %c0_i32_0 = arith.constant 0 : i32
    return %arg0, %c0_i32 : i32, i32
  }
}

</mosaic_0001>

<llo_original>
// kernel: tpu_custom_call.1
$region0: #{tpu_custom_call.1}
  #allocation0 [shape = 'u32[]', space=smem, size = 0x4, offset = 0x4, fixed_abs, tag = 'smem constant byte address 0x4 - core index']
  #allocation1 [shape = 'u32[72,128]{1,0:T(1,128)}', space=vmem, size = 0x9000, scoped, tag = 'internal scratch']
  %s0 = inlined_call_operand.vmem [shape: s32[8,1], index: 0, kind: input, shape index: {}]
  %s1 = inlined_call_operand.vmem [shape: f32[8,128], index: 1, kind: input, shape index: {}]
  %s2 = inlined_call_operand.hbm [shape: f32[16,128], index: 2, kind: input, shape index: {}]
  %s3 = inlined_call_operand.vmem [shape: f32[8,1], index: 3, kind: output, shape index: {}]
  %s4 = sld [smem:[#allocation0]]
  $region26: #{tpu_custom_call.1} parent=0
    _
  %s6 = ssub.s32 1, %s4
  %s7 = scalar_select 0, %s6, %s4
  $region1: #{tpu_custom_call.1} parent=0
    #allocation2 [shape = 'u8[8192]{0}', space=vmem, size = 0x2000, scoped, tag = 'input window, operand 2, single buffered']
    #allocation3 [shape = 's32[1]{0}', space=sflag, size = 0x4, scoped, tag = 'scoped memory for tpu_custom_call.1']
    %8 = vsyncpa [#allocation3], 0
    // Predicated region
    $region2: #{tpu_custom_call.1} parent=1 // pred_check
      _
    $region3: #{tpu_custom_call.1} parent=1 // pred_check_branch
      %10 = sbr.rel (0) target = $region5
    $region4: #{tpu_custom_call.1} parent=1 // pred_region
      _
    $region5: #{tpu_custom_call.1} parent=1 // pred_fallthru
      _
    // Predicated region
    $region6: #{tpu_custom_call.1} parent=1 // pred_check
      _
    $region7: #{tpu_custom_call.1} parent=1 // pred_check_branch
      %12 = sbr.rel (0) target = $region9
    $region8: #{tpu_custom_call.1} parent=1 // pred_region
      _
    $region9: #{tpu_custom_call.1} parent=1 // pred_fallthru
      _
    // Predicated region
    $region10: #{tpu_custom_call.1} parent=1 // pred_check
      _
    $region11: #{tpu_custom_call.1} parent=1 // pred_check_branch
      %14 = sbr.rel (0) target = $region13
    $region12: #{tpu_custom_call.1} parent=1 // pred_region
      %16 = vsyncadd [#allocation3], 0
      %s17 = sshll.u32 %s2, 4
      %s18 = int_to_ptr.hbm [resolvable:$true] %s17
      %s19 = sshll.u32 [#allocation2], 4
      %s20 = int_to_ptr.vmem [resolvable:$true] %s19
      %25 = dma.hbm_to_vmem [thread:$0]  %s18, 256, %s20, [#allocation3], 128, 128, 8
    $region13: #{tpu_custom_call.1} parent=1 // pred_fallthru
      _
    // Predicated region
    $region14: #{tpu_custom_call.1} parent=1 // pred_check
      _
    $region15: #{tpu_custom_call.1} parent=1 // pred_check_branch
      %27 = sbr.rel (0) target = $region17
    $region16: #{tpu_custom_call.1} parent=1 // pred_region
      %29 = dma.done [#allocation3], 256
    $region17: #{tpu_custom_call.1} parent=1 // pred_fallthru
      _
    %v30 = vld [vmem:[%s1] sm:$0xff]
    %v31 = vld [vmem:[%s0] sm:$0xff]
    %v32 = vld [vmem:[#allocation2] sm:$0xff]
    %v33 = vld [vmem:[#allocation2 + $0x8] sm:$0xff]
    %v34 = vlaneseq
    %v35 = vand.u32 %v34, 127
    %36 = vset.pattern.permute.xlu0 0
    %37 = vperm.xlu0 %36, %v31
    %v38 = vpop.permute.xlu0 %37
    %vm39 = vcmp.eq.s32.totalorder %v38, %v35
    %v40 = vsel %vm39, 1, 0
    %v41 = vcvt.s32.f32 %v40
    %vm42 = vcmask 130048
    %v44 = vsel %vm42, %v41, 0
    %46 = vmatpush.msra.mxu0 0.0
    %47 = vmatpush.msra.mxu0 0.0
    %48 = vmatpush.msra.mxu0 0.0
    %49 = vmatpush.msra.mxu0 0.0
    %50 = vmatpush.msra.mxu0 0.0
    %51 = vmatpush.msra.mxu0 0.0
    %52 = vmatpush.msra.mxu0 0.0
    %53 = vmatpush.msra.mxu0 0.0
    %54 = vmatpush.msra.mxu0 0.0
    %55 = vmatpush.msra.mxu0 0.0
    %56 = vmatpush.msra.mxu0 0.0
    %57 = vmatpush.msra.mxu0 0.0
    %58 = vmatpush.msra.mxu0 0.0
    %59 = vmatpush.msra.mxu0 0.0
    %60 = vmatpush.msra.mxu0 %v33
    %61 = vmatpush.msra.mxu0 %v32
    %62 = vmatmul.f32.gmra.mxu0 %v44
    %v63 = vpop.f32.mrf.mxu0
    %v64 = vadd.f32 0.0, %v63
    %65 = vdwg.mxu0
    %v66 = vsub.f32 %v30, %v64
    %v67 = vmul.f32 %v66, %v66
    %68 = vadd.xlane.f32.xlu0 %v67
    %v69 = vpop.xlane.xlu0 %68
    %v70 = vmax.f32 %v69, 1e-12
    %v71 = vmin.f32 %v70, 1e+12
    %v72 = vlaneseq
    %v73 = vshrl.u32 %v72, 7
    %s74 = smul.u32 0, 8
    %v75 = vstv %s74
    %v76 = vadd.s32 %v73, %v75
    %vm77 = vcmp.lt.s32.totalorder %v76, 8
    %v78 = vsel %vm77, %v71, 0.0
    %vm79 = vcmask 7168
    %80 = vst.msk [vmem:[%s3] sm:$0xff] %vm79, %v78
    // Predicated region
    $region18: #{tpu_custom_call.1} parent=1 // pred_check
      _
    $region19: #{tpu_custom_call.1} parent=1 // pred_check_branch
      %82 = sbr.rel (0) target = $region21
    $region20: #{tpu_custom_call.1} parent=1 // pred_region
      _
    $region21: #{tpu_custom_call.1} parent=1 // pred_fallthru
      _
    // Predicated region
    $region22: #{tpu_custom_call.1} parent=1 // pred_check
      _
    $region23: #{tpu_custom_call.1} parent=1 // pred_check_branch
      %84 = sbr.rel (0) target = $region25
    $region24: #{tpu_custom_call.1} parent=1 // pred_region
      _
    $region25: #{tpu_custom_call.1} parent=1 // pred_fallthru
      _
    %85 = vsyncpa [#allocation3], 1

</llo_original>
